<compile_context>
chip_gen: v7x
topology: tpu7x:2x2x1
jax: 0.10.0
libtpu: 0.0.40
codegen_flags: <defaults>
</compile_context>

<pallas_src>
import functools

import jax
import jax.numpy as jnp
from jax.experimental import pallas as pl
from jax.experimental.pallas import tpu as pltpu


_TILE_VMEM_BUDGET_BYTES = 24 * 1024 * 1024   # double-buffered z input + output tiles
_VMEM_LIMIT_BYTES = 48 * 1024 * 1024         # leaves headroom on v7x (64 MiB physical)


def adain_kernel(z_ref, mu_v_ref, sigma_v_ref, out_ref, *, eps, tile_b):
    i = pl.program_id(0)
    row0 = i * tile_b
    if tile_b % 8 == 0:                       # static Python check (tile_b is an int)
        row0 = pl.multiple_of(row0, 8)

    z = z_ref[...]                                         # (tile_b, D)
    mu_v = mu_v_ref[pl.ds(row0, tile_b), :]                # (tile_b, 1) VMEM view
    sigma_v = sigma_v_ref[pl.ds(row0, tile_b), :]          # (tile_b, 1) VMEM view

    # Instance statistics along the lane (feature) axis — two-pass variance.
    mu_z = jnp.mean(z, axis=1, keepdims=True)              # (tile_b, 1)
    zc = z - mu_z                                          # (tile_b, D), reused below
    var_z = jnp.mean(zc * zc, axis=1, keepdims=True)       # biased variance
    sigma_z = jnp.sqrt(var_z) + eps                        # (tile_b, 1)

    # Fused per-row scale/shift; reciprocal only touches (tile_b, 1) values.
    inv_sigma = pl.reciprocal(sigma_z, approx=False)       # (tile_b, 1)
    scale = sigma_v * inv_sigma                            # (tile_b, 1)

    # Single full-block, lane-dense store.
    out_ref[...] = zc * scale + mu_v                       # (tile_b, D)


def _choose_tile_b(B, D):
    # ~4 live (tile_b, D) f32 buffers: double-buffered z input + output.
    rows = _TILE_VMEM_BUDGET_BYTES // (4 * D * 4)
    rows = (rows // 8) * 8
    rows = max(8, min(1024, rows))
    if B <= rows:
        return B       # single full-batch block (block shape == full array dims)
    return rows


def adain(z, mu_v, sigma_v, *, eps=1e-5, tile_b=None):
    B, D = z.shape
    if tile_b is None:
        tile_b = _choose_tile_b(B, D)
    if tile_b < B and tile_b % 8 != 0:
        raise ValueError("tile_b must be a multiple of 8 when smaller than B")

    # Pad the batch up to a tile multiple (padded rows stay finite: z=0 ->
    # sigma_z=eps, sigma_v=0 -> out=0), then slice the result back.
    n_tiles = pl.cdiv(B, tile_b)
    B_pad = n_tiles * tile_b
    if B_pad != B:
        pad = B_pad - B
        z = jnp.pad(z, ((0, pad), (0, 0)))
        mu_v = jnp.pad(mu_v, ((0, pad), (0, 0)))
        sigma_v = jnp.pad(sigma_v, ((0, pad), (0, 0)))

    kernel = functools.partial(adain_kernel, eps=eps, tile_b=tile_b)
    out = pl.pallas_call(
        kernel,
        out_shape=jax.ShapeDtypeStruct((B_pad, D), z.dtype),
        grid_spec=pltpu.PrefetchScalarGridSpec(
            num_scalar_prefetch=0,
            grid=(n_tiles,),
            in_specs=[
                pl.BlockSpec((tile_b, D), lambda i: (i, 0)),    # z: one big tile/step
                pl.BlockSpec((B_pad, 1), lambda i: (0, 0)),     # mu_v: VMEM-resident
                pl.BlockSpec((B_pad, 1), lambda i: (0, 0)),     # sigma_v: VMEM-resident
            ],
            out_specs=pl.BlockSpec((tile_b, D), lambda i: (i, 0)),
        ),
        compiler_params=pltpu.CompilerParams(
            dimension_semantics=("parallel",),
            vmem_limit_bytes=_VMEM_LIMIT_BYTES,
        ),
    )(z, mu_v, sigma_v)
    return out[:B] if B_pad != B else out


def adain_ref(z, mu_v, sigma_v, eps=1e-5):
    mu_z = jnp.mean(z, axis=1, keepdims=True)
    sigma_z = jnp.sqrt(jnp.var(z, axis=1, keepdims=True)) + eps
    return sigma_v * (z - mu_z) / sigma_z + mu_v


if __name__ == "__main__":
    key = jax.random.PRNGKey(0)
    kz, km, ks = jax.random.split(key, 3)

    # Small default case (single-block path).
    B, D = 8, 128
    z = jax.random.normal(kz, (B, D), dtype=jnp.float32)
    mu_v = jax.random.normal(km, (B, 1), dtype=jnp.float32)
    sigma_v = jax.random.uniform(ks, (B, 1), dtype=jnp.float32) + 0.5

    out = adain(z, mu_v, sigma_v)
    jax.block_until_ready(out)
    ref = adain_ref(z, mu_v, sigma_v)
    assert out.shape == (B, D) and out.dtype == jnp.float32
    assert jnp.allclose(out, ref, atol=1e-5, rtol=1e-5), "mismatch vs reference"

    # Exercise the multi-step grid + ragged-batch padding path with a forced
    # small tile (B=20 pads to 24 rows, 3 grid steps).
    B2, D2 = 20, 128
    kz2, km2, ks2 = jax.random.split(jax.random.PRNGKey(1), 3)
    z2 = jax.random.normal(kz2, (B2, D2), dtype=jnp.float32)
    mu_v2 = jax.random.normal(km2, (B2, 1), dtype=jnp.float32)
    sigma_v2 = jax.random.uniform(ks2, (B2, 1), dtype=jnp.float32) + 0.5

    out2 = adain(z2, mu_v2, sigma_v2, tile_b=8)
    jax.block_until_ready(out2)
    ref2 = adain_ref(z2, mu_v2, sigma_v2)
    assert out2.shape == (B2, D2)
    assert jnp.allclose(out2, ref2, atol=1e-5, rtol=1e-5), "mismatch (tiled path)"

    print("KERNEL_OK")
</pallas_src>

<mosaic_0001>
module attributes {stable_mosaic.version = 11 : i64} {
  func.func @adain_kernel(%arg0: i32, %arg1: memref<8x128xf32, #tpu.memory_space<vmem>>, %arg2: memref<8x1xf32, #tpu.memory_space<vmem>>, %arg3: memref<8x1xf32, #tpu.memory_space<vmem>>, %arg4: memref<8x128xf32, #tpu.memory_space<vmem>>) attributes {dimension_semantics = [#tpu.dimension_semantics<parallel>], iteration_bounds = array<i64: 1>, scalar_prefetch = 0 : i64, scratch_operands = 0 : i64, tpu.core_type = #tpu.core_type<tc>, window_params = [{transform_indices = @transform_0, window_bounds = array<i64: 8, 128>}, {pipeline_mode = #tpu.pipeline_mode<synchronous>, transform_indices = @transform_1, window_bounds = array<i64: 8, 1>}, {pipeline_mode = #tpu.pipeline_mode<synchronous>, transform_indices = @transform_2, window_bounds = array<i64: 8, 1>}, {transform_indices = @transform_3, window_bounds = array<i64: 8, 128>}]} {
    %c8_i32 = arith.constant 8 : i32
    %0 = arith.muli %arg0, %c8_i32 : i32
    %1 = tpu.assume_multiple %0, 8 : i32
    %c0 = arith.constant 0 : index
    %c0_0 = arith.constant 0 : index
    %2 = vector.load %arg1[%c0, %c0_0] : memref<8x128xf32, #tpu.memory_space<vmem>>, vector<8x128xf32>
    %3 = arith.index_cast %1 : i32 to index
    %c0_1 = arith.constant 0 : index
    %4 = vector.load %arg2[%3, %c0_1] : memref<8x1xf32, #tpu.memory_space<vmem>>, vector<8x1xf32>
    %5 = arith.index_cast %1 : i32 to index
    %c0_2 = arith.constant 0 : index
    %6 = vector.load %arg3[%5, %c0_2] : memref<8x1xf32, #tpu.memory_space<vmem>>, vector<8x1xf32>
    %cst = arith.constant dense<0.000000e+00> : vector<8xf32>
    %7 = vector.multi_reduction <add>, %2, %cst [1] : vector<8x128xf32> to vector<8xf32>
    %8 = vector.shape_cast %7 : vector<8xf32> to vector<8x1xf32>
    %cst_3 = arith.constant 1.280000e+02 : f32
    %9 = vector.broadcast %cst_3 : f32 to vector<8x1xf32>
    %10 = arith.divf %8, %9 : vector<8x1xf32>
    %11 = vector.broadcast %10 : vector<8x1xf32> to vector<8x128xf32>
    %12 = arith.subf %2, %11 : vector<8x128xf32>
    %13 = arith.mulf %12, %12 : vector<8x128xf32>
    %cst_4 = arith.constant dense<0.000000e+00> : vector<8xf32>
    %14 = vector.multi_reduction <add>, %13, %cst_4 [1] : vector<8x128xf32> to vector<8xf32>
    %15 = vector.shape_cast %14 : vector<8xf32> to vector<8x1xf32>
    %cst_5 = arith.constant 1.280000e+02 : f32
    %16 = vector.broadcast %cst_5 : f32 to vector<8x1xf32>
    %17 = arith.divf %15, %16 : vector<8x1xf32>
    %18 = math.sqrt %17 : vector<8x1xf32>
    %cst_6 = arith.constant 9.99999974E-6 : f32
    %19 = vector.broadcast %cst_6 : f32 to vector<8x1xf32>
    %20 = arith.addf %18, %19 : vector<8x1xf32>
    %21 = tpu.reciprocal %20 : vector<8x1xf32> -> vector<8x1xf32>
    %22 = arith.mulf %6, %21 : vector<8x1xf32>
    %23 = vector.broadcast %22 : vector<8x1xf32> to vector<8x128xf32>
    %24 = arith.mulf %12, %23 : vector<8x128xf32>
    %25 = vector.broadcast %4 : vector<8x1xf32> to vector<8x128xf32>
    %26 = arith.addf %24, %25 : vector<8x128xf32>
    %c0_7 = arith.constant 0 : index
    %c0_8 = arith.constant 0 : index
    %27 = vector.load %arg4[%c0_7, %c0_8] : memref<8x128xf32, #tpu.memory_space<vmem>>, vector<8x128xf32>
    tpu.vector_store %arg4[%c0_7, %c0_8], %26 {strides = array<i32>} : memref<8x128xf32, #tpu.memory_space<vmem>>, vector<8x128xf32>,
    return
  }
  func.func @transform_0(%arg0: i32) -> (i32, i32) {
    %c0_i32 = arith.constant 0 : i32
    %c0_i32_0 = arith.constant 0 : i32
    return %arg0, %c0_i32 : i32, i32
  }
  func.func @transform_1(%arg0: i32) -> (i32, i32) {
    %c0_i32 = arith.constant 0 : i32
    %c0_i32_0 = arith.constant 0 : i32
    %c0_i32_1 = arith.constant 0 : i32
    return %c0_i32, %c0_i32_0 : i32, i32
  }
  func.func @transform_2(%arg0: i32) -> (i32, i32) {
    %c0_i32 = arith.constant 0 : i32
    %c0_i32_0 = arith.constant 0 : i32
    %c0_i32_1 = arith.constant 0 : i32
    return %c0_i32, %c0_i32_0 : i32, i32
  }
  func.func @transform_3(%arg0: i32) -> (i32, i32) {
    %c0_i32 = arith.constant 0 : i32
    %c0_i32_0 = arith.constant 0 : i32
    return %arg0, %c0_i32 : i32, i32
  }
}

</mosaic_0001>

<llo_original>
// kernel: tpu_custom_call.1
$region0: #{tpu_custom_call.1}
  #allocation0 [shape = 'u32[]', space=smem, size = 0x4, offset = 0x4, fixed_abs, tag = 'smem constant byte address 0x4 - core index']
  #allocation1 [shape = 'u32[144,128]{1,0:T(1,128)}', space=vmem, size = 0x12000, scoped, tag = 'internal scratch']
  %s0 = inlined_call_operand.vmem [shape: f32[8,128], index: 0, kind: input, shape index: {}]
  %s1 = inlined_call_operand.vmem [shape: f32[8,1], index: 1, kind: input, shape index: {}]
  %s2 = inlined_call_operand.vmem [shape: f32[8,1], index: 2, kind: input, shape index: {}]
  %s3 = inlined_call_operand.hbm [shape: f32[8,128], index: 3, kind: output, shape index: {}]
  %s4 = sld [smem:[#allocation0]]
  $region22: #{tpu_custom_call.1} parent=0
    _
  %s6 = ssub.s32 1, %s4
  %s7 = scalar_select 0, %s6, %s4
  $region1: #{tpu_custom_call.1} parent=0
    #allocation2 [shape = 'u8[4096]{0}', space=vmem, size = 0x1000, scoped, tag = 'output window, operand 0, single buffered']
    #allocation3 [shape = 's32[1]{0}', space=sflag, size = 0x4, scoped, tag = 'scoped memory for tpu_custom_call.1']
    %8 = vsyncpa [#allocation3], 0
    // Predicated region
    $region2: #{tpu_custom_call.1} parent=1 // pred_check
      _
    $region3: #{tpu_custom_call.1} parent=1 // pred_check_branch
      %10 = sbr.rel (0) target = $region5
    $region4: #{tpu_custom_call.1} parent=1 // pred_region
      _
    $region5: #{tpu_custom_call.1} parent=1 // pred_fallthru
      _
    // Predicated region
    $region6: #{tpu_custom_call.1} parent=1 // pred_check
      _
    $region7: #{tpu_custom_call.1} parent=1 // pred_check_branch
      %12 = sbr.rel (0) target = $region9
    $region8: #{tpu_custom_call.1} parent=1 // pred_region
      _
    $region9: #{tpu_custom_call.1} parent=1 // pred_fallthru
      _
    // Predicated region
    $region10: #{tpu_custom_call.1} parent=1 // pred_check
      _
    $region11: #{tpu_custom_call.1} parent=1 // pred_check_branch
      %14 = sbr.rel (0) target = $region13
    $region12: #{tpu_custom_call.1} parent=1 // pred_region
      _
    $region13: #{tpu_custom_call.1} parent=1 // pred_fallthru
      _
    %s15 = smul.u32 0, 8
    %v16 = vld [vmem:[%s0] sm:$0xff]
    %s17 = scalar_lea.vmem %s1, %s15
    %v18 = vld [vmem:[%s17] sm:$0xff]
    %s19 = scalar_lea.vmem %s2, %s15
    %v20 = vld [vmem:[%s19] sm:$0xff]
    %21 = vadd.xlane.f32.xlu0 %v16
    %v22 = vpop.xlane.xlu0 %21
    %v23 = vrcp.pop 128.0
    %v24 = vmul.f32 %v22, %v23
    %v25 = vsub.f32 %v16, %v24
    %v26 = vmul.f32 %v25, %v25
    %27 = vadd.xlane.f32.xlu0 %v26
    %v28 = vpop.xlane.xlu0 %27
    %v29 = vmul.f32 %v28, %v23
    %v30 = vrsqrt.pop %v29
    %v31 = vmul.f32 %v29, %v30
    %vm32 = vcmp.eq.f32.partialorder %v29, inf
    %v33 = vsel %vm32, %v29, %v31
    %vm34 = vcmp.eq.f32.partialorder %v29, 0.0
    %v35 = vand.u32 %v29, 2147483648
    %v36 = vsel %vm34, %v35, %v33
    %v37 = vadd.f32 %v36, 1e-05
    %v38 = vrcp.pop %v37
    %v39 = vmul.f32 %v20, %v38
    %41 = vset.pattern.permute.xlu0 0
    %42 = vperm.xlu0 %41, %v39
    %v43 = vpop.permute.xlu0 %42
    %v45 = vmul.f32 %v25, %v43
    %47 = vset.pattern.permute.xlu0 0
    %48 = vperm.xlu0 %47, %v18
    %v49 = vpop.permute.xlu0 %48
    %v51 = vadd.f32 %v45, %v49
    %52 = vst [vmem:[#allocation2] sm:$0xff] %v51
    // Predicated region
    $region14: #{tpu_custom_call.1} parent=1 // pred_check
      _
    $region15: #{tpu_custom_call.1} parent=1 // pred_check_branch
      %54 = sbr.rel (0) target = $region17
    $region16: #{tpu_custom_call.1} parent=1 // pred_region
      %s56 = ssub.s32 128, 128
      %57 = vsyncadd [#allocation3], %s56
      %s59 = sshll.u32 [#allocation2], 4
      %s60 = int_to_ptr.vmem [resolvable:$true] %s59
      %62 = dma.vmem_to_hbm [thread:$0]  %s60, 128, %s3, [#allocation3]
    $region17: #{tpu_custom_call.1} parent=1 // pred_fallthru
      _
    // Predicated region
    $region18: #{tpu_custom_call.1} parent=1 // pred_check
      _
    $region19: #{tpu_custom_call.1} parent=1 // pred_check_branch
      %64 = sbr.rel (0) target = $region21
    $region20: #{tpu_custom_call.1} parent=1 // pred_region
      %65 = dma.done [#allocation3], 128
    $region21: #{tpu_custom_call.1} parent=1 // pred_fallthru
      _
    %66 = vsyncpa [#allocation3], 1

</llo_original>
